<compile_context>
chip_gen: v5e
topology: v5e:2x2
jax: 0.10.0
libtpu: 0.0.40
codegen_flags: <defaults>
</compile_context>

<pallas_src>
import functools

import jax
import jax.numpy as jnp
from jax.experimental import pallas as pl
from jax.experimental.pallas import tpu as pltpu

LANES = 128      # vreg lane width
SUBLANES = 8     # vreg sublane depth (f32)


def _cdiv(a, b):
    return -(-a // b)


def _round_up(a, m):
    return _cdiv(a, m) * m


def _bce_partial_kernel(p_ref, t_ref, psum_ref, *, block_rows):
    """One grid step: BCE on a (block_rows, 128) tile -> (8, 128) partial sums."""
    p = p_ref[...].astype(jnp.float32)
    t = t_ref[...].astype(jnp.float32)

    # PyTorch nn.BCELoss numerics: log terms clamped at -100.
    log_p = jnp.maximum(jnp.log(p), -100.0)
    log_1mp = jnp.maximum(jnp.log1p(-p), -100.0)
    per_elem = -(t * log_p + (1.0 - t) * log_1mp)

    # Hierarchical reduction: fold 8-row (one-vreg) groups with plain VPU adds,
    # keeping a full (8, 128) vreg of partial sums.  No cross-lane / scalar
    # reduction happens inside the kernel; that tiny collapse is done once in
    # the wrapper after all blocks finish.
    acc = per_elem[0:SUBLANES, :]
    for r in range(SUBLANES, block_rows, SUBLANES):
        acc = acc + per_elem[r:r + SUBLANES, :]

    psum_ref[0] = acc


def non_shift_invariant_loss(inputs, targets, *, size, window, block_rows=1024):
    """Pallas equivalent of NonShiftInvariantLoss.forward with a BCE inner loss.

    inputs : (N, C, window, window) probabilities in (0, 1)
    targets: (N, C, size,   size)   labels
    Returns: (loss_scalar, unadjusted_labels)
    """
    n, c, h, w = inputs.shape
    assert h == window and w == window
    assert targets.shape[-2] == size and targets.shape[-1] == size
    c0 = (size - window) // 2
    c1 = c0 + window

    # Center crop in the wrapper.  This *is* the second return value; no kernel
    # writeback of labels is needed, and the uncropped border is never DMA'd
    # into the kernel.
    unadjusted_labels = targets[:, :, c0:c1, c0:c1]

    total = n * c * window * window

    # Lane-dense slab: flatten to (rows, 128), rows a multiple of the block
    # height.  Padding uses (p=1, t=1), which contributes exactly 0 to the BCE
    # sum, so no masking is needed inside the kernel.
    rows_needed = _cdiv(total, LANES)
    blk = max(SUBLANES, min(block_rows, _round_up(rows_needed, SUBLANES)))
    blk = _round_up(blk, SUBLANES)
    rows = _round_up(rows_needed, blk)
    pad = rows * LANES - total

    p_flat = inputs.reshape(-1)
    t_flat = unadjusted_labels.reshape(-1)
    if pad:
        p_flat = jnp.concatenate([p_flat, jnp.ones((pad,), p_flat.dtype)])
        t_flat = jnp.concatenate([t_flat, jnp.ones((pad,), t_flat.dtype)])
    p2 = p_flat.reshape(rows, LANES)
    t2 = t_flat.reshape(rows, LANES)

    num_blocks = rows // blk
    kernel = functools.partial(_bce_partial_kernel, block_rows=blk)

    partials = pl.pallas_call(
        kernel,
        out_shape=jax.ShapeDtypeStruct((num_blocks, SUBLANES, LANES), jnp.float32),
        grid=(num_blocks,),
        in_specs=[
            pl.BlockSpec((blk, LANES), lambda i: (i, 0)),
            pl.BlockSpec((blk, LANES), lambda i: (i, 0)),
        ],
        out_specs=pl.BlockSpec((1, SUBLANES, LANES), lambda i: (i, 0, 0)),
        compiler_params=pltpu.CompilerParams(
            # Each block writes its own partial-sum slot (no carried accumulator),
            # so the axis is genuinely parallel -> v7x shards it across its 2 TCs.
            dimension_semantics=("parallel",),
            # Explicit, modest VMEM budget: 2 inputs x 2 buffers x ~512 KiB tile
            # plus elementwise temporaries stays far below v7x's 64 MiB.
            vmem_limit_bytes=32 * 1024 * 1024,
        ),
    )(p2, t2)

    # Tiny second-stage reduction + single multiply by precomputed 1/count.
    loss = jnp.sum(partials) * (1.0 / total)
    return loss, unadjusted_labels


def _reference(inputs, targets, *, size, window):
    c0 = (size - window) // 2
    c1 = c0 + window
    t = targets[:, :, c0:c1, c0:c1].astype(jnp.float32)
    p = inputs.astype(jnp.float32)
    log_p = jnp.maximum(jnp.log(p), -100.0)
    log_1mp = jnp.maximum(jnp.log1p(-p), -100.0)
    loss = jnp.mean(-(t * log_p + (1.0 - t) * log_1mp))
    return loss, targets[:, :, c0:c1, c0:c1]


if __name__ == "__main__":
    # Small shapes consistent with the module (size > window, center crop).
    N, C = 2, 4
    SIZE, WINDOW = 20, 16

    key = jax.random.PRNGKey(0)
    k_in, k_tgt = jax.random.split(key)

    # Predicted probabilities (as if after sigmoid), strictly inside (0, 1).
    inputs = jax.nn.sigmoid(jax.random.normal(k_in, (N, C, WINDOW, WINDOW), jnp.float32))
    # Binary targets on the larger canvas.
    targets = (jax.random.uniform(k_tgt, (N, C, SIZE, SIZE)) > 0.5).astype(jnp.float32)

    loss, labels = non_shift_invariant_loss(inputs, targets, size=SIZE, window=WINDOW)
    loss = jax.block_until_ready(loss)
    labels = jax.block_until_ready(labels)

    ref_loss, ref_labels = _reference(inputs, targets, size=SIZE, window=WINDOW)

    assert labels.shape == (N, C, WINDOW, WINDOW)
    assert labels.dtype == targets.dtype
    assert jnp.allclose(labels, ref_labels)
    assert jnp.allclose(loss, ref_loss, rtol=1e-5, atol=1e-6)

    print("KERNEL_OK")
</pallas_src>

<mosaic_0001>
module attributes {stable_mosaic.version = 11 : i64} {
  func.func @_bce_partial_kernel(%arg0: i32, %arg1: memref<16x128xf32, #tpu.memory_space<vmem>>, %arg2: memref<16x128xf32, #tpu.memory_space<vmem>>, %arg3: memref<1x8x128xf32, #tpu.memory_space<vmem>>) attributes {dimension_semantics = [#tpu.dimension_semantics<parallel>], iteration_bounds = array<i64: 1>, scalar_prefetch = 0 : i64, scratch_operands = 0 : i64, tpu.core_type = #tpu.core_type<tc>, window_params = [{transform_indices = @transform_0, window_bounds = array<i64: 16, 128>}, {transform_indices = @transform_1, window_bounds = array<i64: 16, 128>}, {transform_indices = @transform_2, window_bounds = array<i64: 1, 8, 128>}]} {
    %c0 = arith.constant 0 : index
    %c0_0 = arith.constant 0 : index
    %0 = vector.load %arg1[%c0, %c0_0] : memref<16x128xf32, #tpu.memory_space<vmem>>, vector<16x128xf32>
    %c0_1 = arith.constant 0 : index
    %c0_2 = arith.constant 0 : index
    %1 = vector.load %arg2[%c0_1, %c0_2] : memref<16x128xf32, #tpu.memory_space<vmem>>, vector<16x128xf32>
    %2 = math.log %0 : vector<16x128xf32>
    %cst = arith.constant -1.000000e+02 : f32
    %3 = vector.broadcast %cst : f32 to vector<16x128xf32>
    %4 = arith.maximumf %2, %3 : vector<16x128xf32>
    %cst_3 = arith.constant 0.000000e+00 : f32
    %5 = vector.broadcast %cst_3 : f32 to vector<16x128xf32>
    %6 = arith.subf %5, %0 : vector<16x128xf32>
    %7 = math.log1p %6 : vector<16x128xf32>
    %cst_4 = arith.constant -1.000000e+02 : f32
    %8 = vector.broadcast %cst_4 : f32 to vector<16x128xf32>
    %9 = arith.maximumf %7, %8 : vector<16x128xf32>
    %10 = arith.mulf %1, %4 : vector<16x128xf32>
    %cst_5 = arith.constant 1.000000e+00 : f32
    %11 = vector.broadcast %cst_5 : f32 to vector<16x128xf32>
    %12 = arith.subf %11, %1 : vector<16x128xf32>
    %13 = arith.mulf %12, %9 : vector<16x128xf32>
    %14 = arith.addf %10, %13 : vector<16x128xf32>
    %cst_6 = arith.constant 0.000000e+00 : f32
    %15 = vector.broadcast %cst_6 : f32 to vector<16x128xf32>
    %16 = arith.subf %15, %14 : vector<16x128xf32>
    %17 = vector.extract_strided_slice %16 {offsets = [0, 0], sizes = [8, 128], strides = [1, 1]} : vector<16x128xf32> to vector<8x128xf32>
    %18 = vector.extract_strided_slice %16 {offsets = [8, 0], sizes = [8, 128], strides = [1, 1]} : vector<16x128xf32> to vector<8x128xf32>
    %19 = arith.addf %17, %18 : vector<8x128xf32>
    %c0_7 = arith.constant 0 : index
    %c0_8 = arith.constant 0 : index
    %c0_9 = arith.constant 0 : index
    %20 = vector.load %arg3[%c0_7, %c0_8, %c0_9] : memref<1x8x128xf32, #tpu.memory_space<vmem>>, vector<1x8x128xf32>
    %21 = vector.shape_cast %20 : vector<1x8x128xf32> to vector<8x128xf32>
    %22 = vector.shape_cast %19 : vector<8x128xf32> to vector<1x8x128xf32>
    tpu.vector_store %arg3[%c0_7, %c0_8, %c0_9], %22 {strides = array<i32>} : memref<1x8x128xf32, #tpu.memory_space<vmem>>, vector<1x8x128xf32>,
    return
  }
  func.func @transform_0(%arg0: i32) -> (i32, i32) {
    %c0_i32 = arith.constant 0 : i32
    %c0_i32_0 = arith.constant 0 : i32
    return %arg0, %c0_i32 : i32, i32
  }
  func.func @transform_1(%arg0: i32) -> (i32, i32) {
    %c0_i32 = arith.constant 0 : i32
    %c0_i32_0 = arith.constant 0 : i32
    return %arg0, %c0_i32 : i32, i32
  }
  func.func @transform_2(%arg0: i32) -> (i32, i32, i32) {
    %c0_i32 = arith.constant 0 : i32
    %c0_i32_0 = arith.constant 0 : i32
    %c0_i32_1 = arith.constant 0 : i32
    return %arg0, %c0_i32, %c0_i32_0 : i32, i32, i32
  }
}

</mosaic_0001>

<llo_original>
// kernel: tpu_custom_call.1
$region0: #{tpu_custom_call.1}
  #allocation0 [shape = 'u32[]', space=smem, size = 0x4, offset = 0x4, fixed_abs, tag = 'smem constant byte address 0x4 - core index']
  #allocation1 [shape = 'u32[72,128]{1,0:T(1,128)}', space=vmem, size = 0x9000, scoped, tag = 'internal scratch']
  %s0 = inlined_call_operand.hbm [shape: f32[16,128], index: 0, kind: input, shape index: {}]
  %s1 = inlined_call_operand.hbm [shape: f32[16,128], index: 1, kind: input, shape index: {}]
  %s2 = inlined_call_operand.hbm [shape: f32[1,8,128], index: 2, kind: output, shape index: {}]
  %s3 = sld [smem:[#allocation0]]
  $region26: #{tpu_custom_call.1} parent=0
    _
  %s5 = ssub.s32 1, %s3
  %s6 = scalar_select 0, %s5, %s3
  $region1: #{tpu_custom_call.1} parent=0
    #allocation2 [shape = 'u8[8192]{0}', space=vmem, size = 0x2000, scoped, tag = 'input window, operand 0, single buffered']
    #allocation3 [shape = 's32[1]{0}', space=sflag, size = 0x4, scoped, tag = 'scoped memory for tpu_custom_call.1']
    #allocation4 [shape = 's32[1]{0}', space=sflag, size = 0x4, scoped, tag = 'scoped memory for tpu_custom_call.1']
    #allocation5 [shape = 'u8[8192]{0}', space=vmem, size = 0x2000, scoped, tag = 'input window, operand 1, single buffered']
    #allocation6 [shape = 's32[1]{0}', space=sflag, size = 0x4, scoped, tag = 'scoped memory for tpu_custom_call.1']
    #allocation7 [shape = 'u8[4096]{0}', space=vmem, size = 0x1000, scoped, tag = 'output window, operand 0, single buffered']
    %7 = vsyncpa [#allocation3], 0
    %8 = vsyncpa [#allocation6], 0
    %9 = vsyncpa [#allocation4], 0
    // Predicated region
    $region2: #{tpu_custom_call.1} parent=1 // pred_check
      _
    $region3: #{tpu_custom_call.1} parent=1 // pred_check_branch
      %11 = sbr.rel (0) target = $region5
    $region4: #{tpu_custom_call.1} parent=1 // pred_region
      %13 = vsyncadd [#allocation3], 0
      %s14 = sshll.u32 %s0, 4
      %s15 = int_to_ptr.hbm [resolvable:$true] %s14
      %s16 = sshll.u32 [#allocation2], 4
      %s17 = int_to_ptr.vmem [resolvable:$true] %s16
      %22 = dma.hbm_to_vmem [thread:$0]  %s15, 256, %s17, [#allocation3], 128, 128, 8
    $region5: #{tpu_custom_call.1} parent=1 // pred_fallthru
      _
    // Predicated region
    $region6: #{tpu_custom_call.1} parent=1 // pred_check
      _
    $region7: #{tpu_custom_call.1} parent=1 // pred_check_branch
      %24 = sbr.rel (0) target = $region9
    $region8: #{tpu_custom_call.1} parent=1 // pred_region
      %26 = vsyncadd [#allocation6], 0
      %s27 = sshll.u32 %s1, 4
      %s28 = int_to_ptr.hbm [resolvable:$true] %s27
      %s29 = sshll.u32 [#allocation5], 4
      %s30 = int_to_ptr.vmem [resolvable:$true] %s29
      %35 = dma.hbm_to_vmem [thread:$0]  %s28, 256, %s30, [#allocation6], 128, 128, 8
    $region9: #{tpu_custom_call.1} parent=1 // pred_fallthru
      _
    // Predicated region
    $region10: #{tpu_custom_call.1} parent=1 // pred_check
      _
    $region11: #{tpu_custom_call.1} parent=1 // pred_check_branch
      %37 = sbr.rel (0) target = $region13
    $region12: #{tpu_custom_call.1} parent=1 // pred_region
      %39 = dma.done [#allocation3], 256
    $region13: #{tpu_custom_call.1} parent=1 // pred_fallthru
      _
    // Predicated region
    $region14: #{tpu_custom_call.1} parent=1 // pred_check
      _
    $region15: #{tpu_custom_call.1} parent=1 // pred_check_branch
      %41 = sbr.rel (0) target = $region17
    $region16: #{tpu_custom_call.1} parent=1 // pred_region
      %43 = dma.done [#allocation6], 256
    $region17: #{tpu_custom_call.1} parent=1 // pred_fallthru
      _
    %v44 = vld [vmem:[#allocation2] sm:$0xff]
    %v45 = vld [vmem:[#allocation2 + $0x8] sm:$0xff]
    %v46 = vld [vmem:[#allocation5] sm:$0xff]
    %v47 = vld [vmem:[#allocation5 + $0x8] sm:$0xff]
    %v48 = vlog2.pop %v44
    %v49 = vmul.f32 %v48, 0.6931472
    %v50 = vlog2.pop %v45
    %v51 = vmul.f32 %v50, 0.6931472
    %v52 = vmax.f32 %v49, -100.0
    %v53 = vmax.f32 %v51, -100.0
    %v54 = vsub.f32 0.0, %v44
    %v55 = vsub.f32 0.0, %v45
    %v56 = vadd.f32 %v54, 1.0
    %v57 = vlog2.pop %v56
    %v58 = vmul.f32 %v57, 0.6931472
    %v59 = vmul.f32 -0.5, %v54
    %v60 = vadd.f32 %v59, 1.0
    %v61 = vmul.f32 %v60, %v54
    %v62 = vand.u32 2147483647, %v54
    %vm63 = vcmp.lt.f32.partialorder %v62, 0.0004427343
    %v64 = vsel %vm63, %v61, %v58
    %v65 = vadd.f32 %v55, 1.0
    %v66 = vlog2.pop %v65
    %v67 = vmul.f32 %v66, 0.6931472
    %v68 = vmul.f32 -0.5, %v55
    %v69 = vadd.f32 %v68, 1.0
    %v70 = vmul.f32 %v69, %v55
    %v71 = vand.u32 2147483647, %v55
    %vm72 = vcmp.lt.f32.partialorder %v71, 0.0004427343
    %v73 = vsel %vm72, %v70, %v67
    %v74 = vmax.f32 %v64, -100.0
    %v75 = vmax.f32 %v73, -100.0
    %v76 = vmul.f32 %v46, %v52
    %v77 = vmul.f32 %v47, %v53
    %v78 = vsub.f32 1.0, %v46
    %v79 = vsub.f32 1.0, %v47
    %v80 = vmul.f32 %v78, %v74
    %v81 = vmul.f32 %v79, %v75
    %v82 = vadd.f32 %v76, %v80
    %v83 = vadd.f32 %v77, %v81
    %v84 = vsub.f32 0.0, %v82
    %v85 = vsub.f32 0.0, %v83
    %v86 = vadd.f32 %v84, %v85
    %87 = vst [vmem:[#allocation7] sm:$0xff] %v86
    // Predicated region
    $region18: #{tpu_custom_call.1} parent=1 // pred_check
      _
    $region19: #{tpu_custom_call.1} parent=1 // pred_check_branch
      %89 = sbr.rel (0) target = $region21
    $region20: #{tpu_custom_call.1} parent=1 // pred_region
      %91 = vsyncadd [#allocation4], 0
      %s93 = sshll.u32 [#allocation7], 4
      %s94 = int_to_ptr.vmem [resolvable:$true] %s93
      %s95 = sshll.u32 %s2, 4
      %s96 = int_to_ptr.hbm [resolvable:$true] %s95
      %98 = dma.vmem_to_hbm [thread:$0]  %s94, 128, %s96, [#allocation4]
    $region21: #{tpu_custom_call.1} parent=1 // pred_fallthru
      _
    // Predicated region
    $region22: #{tpu_custom_call.1} parent=1 // pred_check
      _
    $region23: #{tpu_custom_call.1} parent=1 // pred_check_branch
      %100 = sbr.rel (0) target = $region25
    $region24: #{tpu_custom_call.1} parent=1 // pred_region
      %102 = dma.done [#allocation4], 128
    $region25: #{tpu_custom_call.1} parent=1 // pred_fallthru
      _
    %103 = vsyncpa [#allocation3], 1
    %104 = vsyncpa [#allocation6], 1
    %105 = vsyncpa [#allocation4], 1

</llo_original>
